<compile_context>
chip_gen: v5e
topology: v5e:2x2
jax: 0.10.0
libtpu: 0.0.40
codegen_flags: <defaults>
</compile_context>

<pallas_src>
import functools
import math

import jax
import jax.numpy as jnp
from jax.experimental import pallas as pl
from jax.experimental.pallas import tpu as pltpu


def _supports_bf16_eup():
    """bf16 exp only where the EUP supports it (v6e / v7x); f32 on v5e & older."""
    try:
        kind = jax.devices()[0].device_kind.lower()
    except Exception:
        return False
    return ("v6" in kind) or ("v7" in kind)


def self_attention_kernel(x_ref, w_ref, b_ref, out_ref,
                          *, head_dim, heads_per_block, use_bf16_exp):
    # x_ref:   (S, H)          bf16   (batch dim squeezed out)
    # w_ref:   (H, 3*W)        bf16   [Wq_pair | Wk_pair | Wv_pair], W = heads_per_block*head_dim
    #                                 (1/sqrt(head_dim) already folded into Wq)
    # b_ref:   (1, 3*W)        f32    matching fused bias slab
    # out_ref: (S, W)          out dtype — this grid step's head-pair slice of context
    W = heads_per_block * head_dim

    x = x_ref[...]                                            # bf16 (S, H)

    # --- fused Q/K/V projection for this head pair: one bf16 MXU matmul,
    #     f32 accumulation; bias add in f32; ONE cast of the whole block to
    #     bf16 (instead of per-head casts). ---
    qkv = jnp.dot(x, w_ref[...], preferred_element_type=jnp.float32)
    qkv = (qkv + b_ref[0]).astype(jnp.bfloat16)               # (S, 3W) bf16

    q = qkv[:, 0 * W:1 * W]                                   # 128-lane aligned slices
    k = qkv[:, 1 * W:2 * W]
    v = qkv[:, 2 * W:3 * W]

    # Per-head attention for the (at most 2) heads in this block. The loop is
    # a static Python range of length heads_per_block, so the live (S,S)
    # intermediates are bounded by the head pair (the big head loop lives on
    # the grid axis, not in the kernel).
    ctx_parts = []
    for h in range(heads_per_block):
        lo, hi = h * head_dim, (h + 1) * head_dim
        q_h = q[:, lo:hi]                                     # (S, hd) bf16, scale pre-folded
        k_h = k[:, lo:hi]
        v_h = v[:, lo:hi]

        # scores = q_h @ k_h^T (contract head_dim on both; f32 accumulate).
        s = jax.lax.dot_general(
            q_h, k_h, (((1,), (1,)), ((), ())),
            preferred_element_type=jnp.float32)               # (S, S) f32

        s = s - jnp.max(s, axis=-1, keepdims=True)
        if use_bf16_exp:
            ex = jnp.exp(s.astype(jnp.bfloat16))              # bf16 EUP (v6e/v7x)
        else:
            ex = jnp.exp(s)                                   # f32 (v5e: no bf16 EUP)

        denom = jnp.sum(ex.astype(jnp.float32), axis=-1, keepdims=True)
        inv = pl.reciprocal(denom, approx=False)              # exact softmax denom

        # PV matmul on the UNNORMALIZED exp; normalize the (S, hd) result
        # instead of the (S, S) probabilities (~S/head_dim less VALU work).
        ctx = jnp.dot(ex.astype(jnp.bfloat16), v_h,
                      preferred_element_type=jnp.float32)     # (S, hd) f32
        ctx_parts.append(ctx * inv)
        # TODO(synk): attention_mask / domain_attn_mask / head_mask are None in
        # this config; attention-prob dropout is identity (inference).

    # Single lane-dense, 2*head_dim (=128)-wide aligned store of the pair.
    out_ref[...] = jnp.concatenate(ctx_parts, axis=-1).astype(out_ref.dtype)


def pack_attention_params(params, num_heads):
    """One-time parameter packing — call once at load time, NOT per forward.

    Fuses Q/K/V, pre-transposes to (in, out), folds 1/sqrt(head_dim) into the
    query weight/bias, casts weights to bf16, and regroups the output columns
    per PAIR of heads so each grid step can DMA exactly the weight slab it
    needs.
    """
    H = params["q_w"].shape[0]
    assert H % num_heads == 0
    head_dim = H // num_heads
    scale = 1.0 / math.sqrt(head_dim)

    heads_per_block = 2 if num_heads % 2 == 0 else 1
    W = heads_per_block * head_dim
    if W % 128 != 0 and W != H:
        # Mosaic wants lane-dim blocks that are multiples of 128 (or the full
        # dim). For tiny/debug head_dims fall back to one block = all heads.
        heads_per_block = num_heads
        W = H
    P = num_heads // heads_per_block

    def col_blocks(w_t):                       # (H, H) -> (P, H, W)
        return w_t.reshape(H, P, W).transpose(1, 0, 2)

    wq = params["q_w"].T.astype(jnp.float32) * scale
    wk = params["k_w"].T.astype(jnp.float32)
    wv = params["v_w"].T.astype(jnp.float32)
    w_blocks = jnp.concatenate(
        [col_blocks(wq), col_blocks(wk), col_blocks(wv)], axis=-1
    ).astype(jnp.bfloat16)                                    # (P, H, 3W) bf16

    bq = params["q_b"].astype(jnp.float32) * scale
    bk = params["k_b"].astype(jnp.float32)
    bv = params["v_b"].astype(jnp.float32)
    b_blocks = jnp.concatenate(
        [bq.reshape(P, 1, W), bk.reshape(P, 1, W), bv.reshape(P, 1, W)],
        axis=-1)                                              # (P, 1, 3W) f32

    return dict(w_blocks=w_blocks, b_blocks=b_blocks,
                num_heads=num_heads, head_dim=head_dim,
                heads_per_block=heads_per_block)


def bert_self_attention_pallas(hidden_states, packed, out_dtype=None):
    """BertSelfAttention.forward(hidden_states) -> (context_layer,).

    `packed` comes from pack_attention_params(). Pass out_dtype=jnp.bfloat16 to
    halve output writeback when the downstream dense layer consumes bf16.
    """
    B, S, H = hidden_states.shape
    head_dim = packed["head_dim"]
    hb = packed["heads_per_block"]
    W = hb * head_dim
    P = packed["num_heads"] // hb
    assert P * W == H
    out_dtype = hidden_states.dtype if out_dtype is None else out_dtype

    x_bf16 = hidden_states.astype(jnp.bfloat16)               # halve x DMA bytes

    # VMEM budget: actual working set with 2x headroom, clamped so it fits
    # every generation's physical VMEM (v7x has only 64 MiB per TensorCore).
    out_bytes = jnp.dtype(out_dtype).itemsize
    est = (2 * S * H * 2                    # x block, double-buffered (bf16)
           + 2 * H * 3 * W * 2              # weight slab, double-buffered (bf16)
           + 2 * 3 * W * 4                  # bias slab
           + 2 * S * W * out_bytes          # out block, double-buffered
           + S * 3 * W * (4 + 2)            # qkv f32 accumulate + bf16 copy
           + hb * S * S * 4 * 3             # per-pair scores / exp / temps
           + S * W * 4)                     # ctx pair
    vmem_limit = int(min(max(2 * est, 32 * 1024 * 1024), 64 * 1024 * 1024))

    kernel = functools.partial(
        self_attention_kernel,
        head_dim=head_dim,
        heads_per_block=hb,
        use_bf16_exp=_supports_bf16_eup())

    context = pl.pallas_call(
        kernel,
        out_shape=jax.ShapeDtypeStruct((B, S, H), out_dtype),
        grid_spec=pltpu.PrefetchScalarGridSpec(
            num_scalar_prefetch=0,
            grid=(B, P),                    # batch x head-pairs, both parallel
            in_specs=[
                # activations: one batch element, constant across the pair axis
                # (Pallas skips the re-fetch when the block index is unchanged)
                pl.BlockSpec((pl.Squeezed(), S, H), lambda b, p: (b, 0, 0)),
                # fused QKV weight / bias slab for this head pair
                pl.BlockSpec((pl.Squeezed(), H, 3 * W), lambda b, p: (p, 0, 0)),
                pl.BlockSpec((pl.Squeezed(), 1, 3 * W), lambda b, p: (p, 0, 0)),
            ],
            out_specs=pl.BlockSpec((pl.Squeezed(), S, W), lambda b, p: (b, 0, p)),
        ),
        compiler_params=pltpu.CompilerParams(
            dimension_semantics=("parallel", "parallel"),
            vmem_limit_bytes=vmem_limit,
        ),
    )(x_bf16, packed["w_blocks"], packed["b_blocks"])
    # TODO(synk): for large batch the weight slabs re-stream once per batch
    # element; if that ever dominates, hoist the QKV projection into its own
    # pallas_call and keep only the attention on the (B, pair) grid.

    return (context,)


# ---------------- pure-JAX f32 reference (for correctness check) ----------------
def _ref_self_attention(x, params, num_heads):
    B, S, H = x.shape
    hd = H // num_heads
    q = x @ params["q_w"].T + params["q_b"]
    k = x @ params["k_w"].T + params["k_b"]
    v = x @ params["v_w"].T + params["v_b"]

    def split(t):
        return jnp.transpose(t.reshape(B, S, num_heads, hd), (0, 2, 1, 3))

    qh, kh, vh = split(q), split(k), split(v)
    scores = jnp.einsum("bhqd,bhkd->bhqk", qh, kh) / math.sqrt(hd)
    probs = jax.nn.softmax(scores, axis=-1)
    ctx = jnp.einsum("bhqk,bhkd->bhqd", probs, vh)
    return jnp.transpose(ctx, (0, 2, 1, 3)).reshape(B, S, H)


def make_params(key, H):
    ks = jax.random.split(key, 6)
    s = 0.02
    return {
        "q_w": s * jax.random.normal(ks[0], (H, H), jnp.float32),
        "q_b": 0.1 * jax.random.normal(ks[1], (H,), jnp.float32),
        "k_w": s * jax.random.normal(ks[2], (H, H), jnp.float32),
        "k_b": 0.1 * jax.random.normal(ks[3], (H,), jnp.float32),
        "v_w": s * jax.random.normal(ks[4], (H, H), jnp.float32),
        "v_b": 0.1 * jax.random.normal(ks[5], (H,), jnp.float32),
    }


if __name__ == "__main__":
    # Small config: batch=2, seq=8, hidden=256, 4 heads (head_dim=64) so that a
    # head PAIR is exactly one 128-lane tile and the pair grid axis (P=2) is
    # actually exercised.
    B, S, H = 2, 8, 256
    NUM_HEADS = 4

    root = jax.random.PRNGKey(0)
    k_x, k_p = jax.random.split(root)

    x = jax.random.normal(k_x, (B, S, H), jnp.float32)
    params = make_params(k_p, H)

    packed = pack_attention_params(params, NUM_HEADS)   # one-time parameter prep
    (out,) = bert_self_attention_pallas(x, packed)
    out = jax.block_until_ready(out)

    ref = _ref_self_attention(x, params, NUM_HEADS)
    assert out.shape == (B, S, H)
    max_err = float(jnp.max(jnp.abs(out - ref)))
    # bf16 matmul operands (and bf16 exp on v6e/v7x) vs. the pure-f32 reference
    # -> loosened tolerance; intentional inference-precision choice.
    assert jnp.allclose(out, ref, atol=2e-2, rtol=2e-2), max_err

    print("KERNEL_OK")
</pallas_src>

<mosaic_0001>
module attributes {stable_mosaic.version = 11 : i64} {
  func.func @self_attention_kernel(%arg0: i32, %arg1: i32, %arg2: memref<1x8x256xbf16, #tpu.memory_space<vmem>>, %arg3: memref<1x256x384xbf16, #tpu.memory_space<vmem>>, %arg4: memref<1x1x384xf32, #tpu.memory_space<vmem>>, %arg5: memref<1x8x128xf32, #tpu.memory_space<vmem>>) attributes {dimension_semantics = [#tpu.dimension_semantics<parallel>, #tpu.dimension_semantics<parallel>], iteration_bounds = array<i64: 2, 2>, scalar_prefetch = 0 : i64, scratch_operands = 0 : i64, tpu.core_type = #tpu.core_type<tc>, window_params = [{transform_indices = @transform_0, window_bounds = array<i64: 1, 8, 256>}, {transform_indices = @transform_1, window_bounds = array<i64: 1, 256, 384>}, {transform_indices = @transform_2, window_bounds = array<i64: 1, 1, 384>}, {transform_indices = @transform_3, window_bounds = array<i64: 1, 8, 128>}]} {
    %c0 = arith.constant 0 : index
    %c0_0 = arith.constant 0 : index
    %c0_1 = arith.constant 0 : index
    %0 = vector.load %arg2[%c0, %c0_0, %c0_1] : memref<1x8x256xbf16, #tpu.memory_space<vmem>>, vector<1x8x256xbf16>
    %1 = vector.shape_cast %0 : vector<1x8x256xbf16> to vector<8x256xbf16>
    %c0_2 = arith.constant 0 : index
    %c0_3 = arith.constant 0 : index
    %c0_4 = arith.constant 0 : index
    %2 = vector.load %arg3[%c0_2, %c0_3, %c0_4] : memref<1x256x384xbf16, #tpu.memory_space<vmem>>, vector<1x256x384xbf16>
    %3 = vector.shape_cast %2 : vector<1x256x384xbf16> to vector<256x384xbf16>
    %cst = arith.constant dense<0.000000e+00> : vector<8x384xf32>
    %4 = tpu.matmul %1, %3, %cst {dimension_numbers = #tpu.dot_dimension_numbers<[1], [0], [0], [1], [0, 0, 1, 1], [], []>} : vector<8x256xbf16>, vector<256x384xbf16>, vector<8x384xf32> -> vector<8x384xf32>
    %c0_5 = arith.constant 0 : index
    %c0_6 = arith.constant 0 : index
    %c0_7 = arith.constant 0 : index
    %5 = vector.load %arg4[%c0_5, %c0_6, %c0_7] : memref<1x1x384xf32, #tpu.memory_space<vmem>>, vector<1x1x384xf32>
    %6 = vector.shape_cast %5 : vector<1x1x384xf32> to vector<384xf32>
    %7 = vector.shape_cast %6 : vector<384xf32> to vector<1x384xf32>
    %8 = vector.broadcast %7 : vector<1x384xf32> to vector<8x384xf32>
    %9 = arith.addf %4, %8 : vector<8x384xf32>
    %10 = arith.truncf %9 : vector<8x384xf32> to vector<8x384xbf16>
    %11 = vector.extract_strided_slice %10 {offsets = [0, 0], sizes = [8, 128], strides = [1, 1]} : vector<8x384xbf16> to vector<8x128xbf16>
    %12 = vector.extract_strided_slice %10 {offsets = [0, 128], sizes = [8, 128], strides = [1, 1]} : vector<8x384xbf16> to vector<8x128xbf16>
    %13 = vector.extract_strided_slice %10 {offsets = [0, 256], sizes = [8, 128], strides = [1, 1]} : vector<8x384xbf16> to vector<8x128xbf16>
    %14 = vector.extract_strided_slice %11 {offsets = [0, 0], sizes = [8, 64], strides = [1, 1]} : vector<8x128xbf16> to vector<8x64xbf16>
    %15 = vector.extract_strided_slice %12 {offsets = [0, 0], sizes = [8, 64], strides = [1, 1]} : vector<8x128xbf16> to vector<8x64xbf16>
    %16 = vector.extract_strided_slice %13 {offsets = [0, 0], sizes = [8, 64], strides = [1, 1]} : vector<8x128xbf16> to vector<8x64xbf16>
    %cst_8 = arith.constant dense<0.000000e+00> : vector<8x8xf32>
    %17 = tpu.matmul %14, %15, %cst_8 {dimension_numbers = #tpu.dot_dimension_numbers<[1], [1], [0], [0], [0, 0, 1, 0], [], []>} : vector<8x64xbf16>, vector<8x64xbf16>, vector<8x8xf32> -> vector<8x8xf32>
    %cst_9 = arith.constant dense<0xFF800000> : vector<8xf32>
    %18 = vector.multi_reduction <maximumf>, %17, %cst_9 [1] : vector<8x8xf32> to vector<8xf32>
    %19 = vector.shape_cast %18 : vector<8xf32> to vector<8x1xf32>
    %20 = vector.broadcast %19 : vector<8x1xf32> to vector<8x8xf32>
    %21 = arith.subf %17, %20 : vector<8x8xf32>
    %22 = math.exp %21 : vector<8x8xf32>
    %cst_10 = arith.constant dense<0.000000e+00> : vector<8xf32>
    %23 = vector.multi_reduction <add>, %22, %cst_10 [1] : vector<8x8xf32> to vector<8xf32>
    %24 = vector.shape_cast %23 : vector<8xf32> to vector<8x1xf32>
    %25 = tpu.reciprocal %24 : vector<8x1xf32> -> vector<8x1xf32>
    %26 = arith.truncf %22 : vector<8x8xf32> to vector<8x8xbf16>
    %cst_11 = arith.constant dense<0.000000e+00> : vector<8x64xf32>
    %27 = tpu.matmul %26, %16, %cst_11 {dimension_numbers = #tpu.dot_dimension_numbers<[1], [0], [0], [1], [0, 0, 1, 1], [], []>} : vector<8x8xbf16>, vector<8x64xbf16>, vector<8x64xf32> -> vector<8x64xf32>
    %28 = vector.broadcast %25 : vector<8x1xf32> to vector<8x64xf32>
    %29 = arith.mulf %27, %28 : vector<8x64xf32>
    %30 = vector.extract_strided_slice %11 {offsets = [0, 64], sizes = [8, 64], strides = [1, 1]} : vector<8x128xbf16> to vector<8x64xbf16>
    %31 = vector.extract_strided_slice %12 {offsets = [0, 64], sizes = [8, 64], strides = [1, 1]} : vector<8x128xbf16> to vector<8x64xbf16>
    %32 = vector.extract_strided_slice %13 {offsets = [0, 64], sizes = [8, 64], strides = [1, 1]} : vector<8x128xbf16> to vector<8x64xbf16>
    %cst_12 = arith.constant dense<0.000000e+00> : vector<8x8xf32>
    %33 = tpu.matmul %30, %31, %cst_12 {dimension_numbers = #tpu.dot_dimension_numbers<[1], [1], [0], [0], [0, 0, 1, 0], [], []>} : vector<8x64xbf16>, vector<8x64xbf16>, vector<8x8xf32> -> vector<8x8xf32>
    %cst_13 = arith.constant dense<0xFF800000> : vector<8xf32>
    %34 = vector.multi_reduction <maximumf>, %33, %cst_13 [1] : vector<8x8xf32> to vector<8xf32>
    %35 = vector.shape_cast %34 : vector<8xf32> to vector<8x1xf32>
    %36 = vector.broadcast %35 : vector<8x1xf32> to vector<8x8xf32>
    %37 = arith.subf %33, %36 : vector<8x8xf32>
    %38 = math.exp %37 : vector<8x8xf32>
    %cst_14 = arith.constant dense<0.000000e+00> : vector<8xf32>
    %39 = vector.multi_reduction <add>, %38, %cst_14 [1] : vector<8x8xf32> to vector<8xf32>
    %40 = vector.shape_cast %39 : vector<8xf32> to vector<8x1xf32>
    %41 = tpu.reciprocal %40 : vector<8x1xf32> -> vector<8x1xf32>
    %42 = arith.truncf %38 : vector<8x8xf32> to vector<8x8xbf16>
    %cst_15 = arith.constant dense<0.000000e+00> : vector<8x64xf32>
    %43 = tpu.matmul %42, %32, %cst_15 {dimension_numbers = #tpu.dot_dimension_numbers<[1], [0], [0], [1], [0, 0, 1, 1], [], []>} : vector<8x8xbf16>, vector<8x64xbf16>, vector<8x64xf32> -> vector<8x64xf32>
    %44 = vector.broadcast %41 : vector<8x1xf32> to vector<8x64xf32>
    %45 = arith.mulf %43, %44 : vector<8x64xf32>
    %46 = tpu.concatenate %29, %45 in 1 : vector<8x64xf32>, vector<8x64xf32> -> vector<8x128xf32>
    %c0_16 = arith.constant 0 : index
    %c0_17 = arith.constant 0 : index
    %c0_18 = arith.constant 0 : index
    %47 = vector.load %arg5[%c0_16, %c0_17, %c0_18] : memref<1x8x128xf32, #tpu.memory_space<vmem>>, vector<1x8x128xf32>
    %48 = vector.shape_cast %47 : vector<1x8x128xf32> to vector<8x128xf32>
    %49 = vector.shape_cast %46 : vector<8x128xf32> to vector<1x8x128xf32>
    tpu.vector_store %arg5[%c0_16, %c0_17, %c0_18], %49 {strides = array<i32>} : memref<1x8x128xf32, #tpu.memory_space<vmem>>, vector<1x8x128xf32>,
    return
  }
  func.func @transform_0(%arg0: i32, %arg1: i32) -> (i32, i32, i32) {
    %c0_i32 = arith.constant 0 : i32
    %c0_i32_0 = arith.constant 0 : i32
    %c0_i32_1 = arith.constant 0 : i32
    return %arg0, %c0_i32, %c0_i32_0 : i32, i32, i32
  }
  func.func @transform_1(%arg0: i32, %arg1: i32) -> (i32, i32, i32) {
    %c0_i32 = arith.constant 0 : i32
    %c0_i32_0 = arith.constant 0 : i32
    %c0_i32_1 = arith.constant 0 : i32
    return %arg1, %c0_i32, %c0_i32_0 : i32, i32, i32
  }
  func.func @transform_2(%arg0: i32, %arg1: i32) -> (i32, i32, i32) {
    %c0_i32 = arith.constant 0 : i32
    %c0_i32_0 = arith.constant 0 : i32
    %c0_i32_1 = arith.constant 0 : i32
    return %arg1, %c0_i32, %c0_i32_0 : i32, i32, i32
  }
  func.func @transform_3(%arg0: i32, %arg1: i32) -> (i32, i32, i32) {
    %c0_i32 = arith.constant 0 : i32
    %c0_i32_0 = arith.constant 0 : i32
    return %arg0, %c0_i32, %arg1 : i32, i32, i32
  }
}

</mosaic_0001>

<llo_original>
// kernel: tpu_custom_call.1
$region0: #{tpu_custom_call.1}
  #allocation0 [shape = 'u32[]', space=smem, size = 0x4, offset = 0x4, fixed_abs, tag = 'smem constant byte address 0x4 - core index']
  #allocation1 [shape = 'u32[72,128]{1,0:T(1,128)}', space=vmem, size = 0x9000, scoped, tag = 'internal scratch']
  %s0 = inlined_call_operand.hbm [shape: bf16[2,8,256], index: 0, kind: input, shape index: {}]
  %s1 = inlined_call_operand.hbm [shape: bf16[2,256,384], index: 1, kind: input, shape index: {}]
  %s2 = inlined_call_operand.hbm [shape: f32[2,1,384], index: 2, kind: input, shape index: {}]
  %s3 = inlined_call_operand.hbm [shape: f32[2,8,256], index: 3, kind: output, shape index: {}]
  %s4 = sld [smem:[#allocation0]]
  $region57: #{tpu_custom_call.1} parent=0
    _
  %s6 = ssub.s32 1, %s4
  %s7 = scalar_select 0, %s6, %s4
  $region1: #{tpu_custom_call.1} parent=0
    #allocation2 [shape = 'u8[8192]{0}', space=vmem, size = 0x2000, scoped, tag = 'input window, operand 0']
    #allocation3 [shape = 's32[2]{0}', space=sflag, size = 0x8, scoped, tag = 'scoped memory for tpu_custom_call.1']
    #allocation4 [shape = 's32[2]{0}', space=sflag, size = 0x8, scoped, tag = 'scoped memory for tpu_custom_call.1']
    #allocation5 [shape = 'u8[393216]{0}', space=vmem, size = 0x60000, scoped, tag = 'input window, operand 1']
    #allocation6 [shape = 's32[2]{0}', space=sflag, size = 0x8, scoped, tag = 'scoped memory for tpu_custom_call.1']
    #allocation7 [shape = 'u8[3072]{0}', space=vmem, size = 0xc00, scoped, tag = 'input window, operand 2']
    #allocation8 [shape = 'u8[8192]{0}', space=vmem, size = 0x2000, scoped, tag = 'output window, operand 0']
    %8 = vsyncpa [#allocation3], 0
    %s9 = scalar_lea.sflag [#allocation3], 1
    %10 = vsyncpa %s9, 0
    %11 = vsyncpa [#allocation6], 0
    %s12 = scalar_lea.sflag [#allocation6], 1
    %13 = vsyncpa %s12, 0
    %14 = vsyncpa [#allocation4], 0
    %s15 = scalar_lea.sflag [#allocation4], 1
    %16 = vsyncpa %s15, 0
    loop: start=0, step=1, limit=6
    $region2: #{tpu_custom_call.1} parent=1 // loop_pre_header
      _
    $region3: #{tpu_custom_call.1} parent=1 // loop_header
      %s18 = sphi 0, %s22
      %p19 = scmp.ge.s32.totalorder %s18, 6
      %s25 = sphi 0, %s37
      %s26 = sphi 0, %s33
      %s27 = sphi 0, %s25
      %s28 = sphi 0, %s26
      %s29 = sphi 0, %s27
      %s30 = sphi 0, %s28
      %s40 = sphi 0, %s42
      %s43 = sphi 0, %s40
      %s44 = sphi 0, %s43
      %s60 = sphi 0, %s44
      %s66 = sphi 0, %s68
      %s69 = sphi 0, %s66
      %s70 = sphi 0, %s69
      %s86 = sphi 0, %s70
      %s92 = sphi 0, %s94
      %s95 = sphi 0, %s92
      %s96 = sphi 0, %s95
      %s112 = sphi 0, %s96
      %s120 = sphi 0, %s122
      %s123 = sphi 0, %s120
      %s124 = sphi 0, %s123
      %s140 = sphi 0, %s124
    $region4: #{tpu_custom_call.1} parent=1 // loop_header_branch
      %21 = sbr.rel (%p19) target = $region8
    $region5: #{tpu_custom_call.1} parent=1 // loop_body
      %s23 = ssub.s32 %s18, 1
      %s24 = ssub.s32 %s18, 2
      %s31 = sadd.s32 1, %s26
      %p32 = scmp.ge.s32.totalorder %s31, 2
      %s33 = scalar_select %p32, 0, %s31
      %s34 = sadd.s32 1, %s25
      %s35 = scalar_select %p32, %s34, %s25
      %p36 = scmp.ge.s32.totalorder %s35, 2
      %s37 = scalar_select %p36, 0, %s35
      %s38 = ssub.s32 %s25, %s37
      %p39 = scmp.eq.s32.totalorder %s38, 0
      %s41 = sadd.s32 %s40, 1
      %s42 = scalar_select %p39, %s40, %s41
      %p45 = pneg %p39
      %p46 = scmp.eq.s32.totalorder %s18, 3
      %p47 = por %p45, %p46
      %p48 = scmp.ne.s32.totalorder %s40, %s43
      %p49 = scmp.eq.s32.totalorder %s18, 0
      %p50 = por %p48, %p49
      %p51 = scmp.ne.s32.totalorder %s40, %s43
      %p52 = scmp.eq.s32.totalorder %s23, 3
      %p53 = por %p51, %p52
      %p54 = scmp.ne.s32.totalorder %s43, %s44
      %p55 = scmp.eq.s32.totalorder %s23, 0
      %p56 = por %p54, %p55
      %p57 = scmp.ne.s32.totalorder %s43, %s44
      %p58 = scmp.eq.s32.totalorder %s24, 3
      %p59 = por %p57, %p58
      %p61 = scmp.ne.s32.totalorder %s44, %s60
      %p62 = scmp.eq.s32.totalorder %s24, 0
      %p63 = por %p61, %p62
      %s64 = ssub.s32 %s26, %s33
      %p65 = scmp.eq.s32.totalorder %s64, 0
      %s67 = sadd.s32 %s66, 1
      %s68 = scalar_select %p65, %s66, %s67
      %p71 = pneg %p65
      %p72 = scmp.eq.s32.totalorder %s18, 3
      %p73 = por %p71, %p72
      %p74 = scmp.ne.s32.totalorder %s66, %s69
      %p75 = scmp.eq.s32.totalorder %s18, 0
      %p76 = por %p74, %p75
      %p77 = scmp.ne.s32.totalorder %s66, %s69
      %p78 = scmp.eq.s32.totalorder %s23, 3
      %p79 = por %p77, %p78
      %p80 = scmp.ne.s32.totalorder %s69, %s70
      %p81 = scmp.eq.s32.totalorder %s23, 0
      %p82 = por %p80, %p81
      %p83 = scmp.ne.s32.totalorder %s69, %s70
      %p84 = scmp.eq.s32.totalorder %s24, 3
      %p85 = por %p83, %p84
      %p87 = scmp.ne.s32.totalorder %s70, %s86
      %p88 = scmp.eq.s32.totalorder %s24, 0
      %p89 = por %p87, %p88
      %s90 = ssub.s32 %s26, %s33
      %p91 = scmp.eq.s32.totalorder %s90, 0
      %s93 = sadd.s32 %s92, 1
      %s94 = scalar_select %p91, %s92, %s93
      %p97 = pneg %p91
      %p98 = scmp.eq.s32.totalorder %s18, 3
      %p99 = por %p97, %p98
      %p100 = scmp.ne.s32.totalorder %s92, %s95
      %p101 = scmp.eq.s32.totalorder %s18, 0
      %p102 = por %p100, %p101
      %p103 = scmp.ne.s32.totalorder %s92, %s95
      %p104 = scmp.eq.s32.totalorder %s23, 3
      %p105 = por %p103, %p104
      %p106 = scmp.ne.s32.totalorder %s95, %s96
      %p107 = scmp.eq.s32.totalorder %s23, 0
      %p108 = por %p106, %p107
      %p109 = scmp.ne.s32.totalorder %s95, %s96
      %p110 = scmp.eq.s32.totalorder %s24, 3
      %p111 = por %p109, %p110
      %p113 = scmp.ne.s32.totalorder %s96, %s112
      %p114 = scmp.eq.s32.totalorder %s24, 0
      %p115 = por %p113, %p114
      %s116 = ssub.s32 %s25, %s37
      %s117 = ssub.s32 %s26, %s33
      %s118 = sor.u32 %s116, %s117
      %p119 = scmp.eq.s32.totalorder %s118, 0
      %s121 = sadd.s32 %s120, 1
      %s122 = scalar_select %p119, %s120, %s121
      %p125 = pneg %p119
      %p126 = scmp.eq.s32.totalorder %s18, 3
      %p127 = por %p125, %p126
      %p128 = scmp.ne.s32.totalorder %s120, %s123
      %p129 = scmp.eq.s32.totalorder %s18, 0
      %p130 = por %p128, %p129
      %p131 = scmp.ne.s32.totalorder %s120, %s123
      %p132 = scmp.eq.s32.totalorder %s23, 3
      %p133 = por %p131, %p132
      %p134 = scmp.ne.s32.totalorder %s123, %s124
      %p135 = scmp.eq.s32.totalorder %s23, 0
      %p136 = por %p134, %p135
      %p137 = scmp.ne.s32.totalorder %s123, %s124
      %p138 = scmp.eq.s32.totalorder %s24, 3
      %p139 = por %p137, %p138
      %p141 = scmp.ne.s32.totalorder %s124, %s140
      %p142 = scmp.eq.s32.totalorder %s24, 0
      %p143 = por %p141, %p142
      %p144 = scmp.le.s32.totalorder 1, %s18
      %p145 = scmp.lt.s32.totalorder %s18, 5
      %p146 = pnand %p144, %p145
      %p147 = pneg %p146
      // Predicated region
      $region9: #{tpu_custom_call.1} parent=5 // pred_check
        _
      $region10: #{tpu_custom_call.1} parent=5 // pred_check_branch
        %149 = sbr.rel (%p146) target = $region12
      $region11: #{tpu_custom_call.1} parent=5 // pred_region
        %s150 = ssub.s32 %s18, 1
      $region12: #{tpu_custom_call.1} parent=5 // pred_fallthru
        _
      %p151 = scmp.lt.s32.totalorder %s18, 4
      // Predicated region
      $region13: #{tpu_custom_call.1} parent=5 // pred_check
        %p152 = pneg %p151
      $region14: #{tpu_custom_call.1} parent=5 // pred_check_branch
        %154 = sbr.rel (%p152) target = $region16
      $region15: #{tpu_custom_call.1} parent=5 // pred_region
        // Predicated region
        $region17: #{tpu_custom_call.1} parent=15 // pred_check
          %p155 = pneg %p50
        $region18: #{tpu_custom_call.1} parent=15 // pred_check_branch
          %157 = sbr.rel (%p155) target = $region20
        $region19: #{tpu_custom_call.1} parent=15 // pred_region
          %s158 = sand.u32 %s40, 1
          %s159 = scalar_lea.sflag [#allocation3], %s158
          %s160 = sand.u32 %s40, 1
          %s161 = smul.addr %s160, 8
          %s162 = scalar_lea.vmem [#allocation2], %s161
          %164 = vsyncadd %s159, 0
          %s165 = smul.addr %s25, 2
          %s166 = smul.addr %s165, 4
          %s167 = scalar_lea.hbm %s0, %s166
          %s169 = sshll.u32 %s167, 4
          %s170 = int_to_ptr.hbm [resolvable:$true] %s169
          %s171 = sshll.u32 %s162, 4
          %s172 = int_to_ptr.vmem [resolvable:$true] %s171
          %174 = dma.hbm_to_vmem [thread:$0]  %s170, 128, %s172, %s159
        $region20: #{tpu_custom_call.1} parent=15 // pred_fallthru
          _
        // Predicated region
        $region21: #{tpu_custom_call.1} parent=15 // pred_check
          %p175 = pneg %p76
        $region22: #{tpu_custom_call.1} parent=15 // pred_check_branch
          %177 = sbr.rel (%p175) target = $region24
        $region23: #{tpu_custom_call.1} parent=15 // pred_region
          %s178 = sand.u32 %s18, 1
          %s179 = scalar_lea.sflag [#allocation6], %s178
          %s180 = sand.u32 %s66, 1
          %s181 = smul.addr %s180, 384
          %s182 = scalar_lea.vmem [#allocation5], %s181
          %184 = vsyncadd %s179, 0
          %s185 = smul.addr %s26, 96
          %s186 = smul.addr %s185, 4
          %s187 = scalar_lea.hbm %s1, %s186
          %s188 = sshll.u32 %s187, 4
          %s189 = int_to_ptr.hbm [resolvable:$true] %s188
          %s190 = sshll.u32 %s182, 4
          %s191 = int_to_ptr.vmem [resolvable:$true] %s190
          %196 = dma.hbm_to_vmem [thread:$0]  %s189, 6144, %s191, %s179, 192, 192, 12
        $region24: #{tpu_custom_call.1} parent=15 // pred_fallthru
          _
        // Predicated region
        $region25: #{tpu_custom_call.1} parent=15 // pred_check
          %p197 = pneg %p102
        $region26: #{tpu_custom_call.1} parent=15 // pred_check_branch
          %199 = sbr.rel (%p197) target = $region28
        $region27: #{tpu_custom_call.1} parent=15 // pred_region
          %s200 = sand.u32 %s18, 1
          %s201 = scalar_lea.sflag [#allocation6], %s200
          %s202 = sand.u32 %s92, 1
          %s203 = smul.addr %s202, 3
          %s204 = scalar_lea.vmem [#allocation7], %s203
          %206 = vsyncadd %s201, 0
          %s207 = smul.addr %s26, 3
          %s208 = scalar_lea.hbm %s2, %s207
          %s210 = sshll.u32 %s208, 4
          %s211 = int_to_ptr.hbm [resolvable:$true] %s210
          %s212 = sshll.u32 %s204, 4
          %s213 = int_to_ptr.vmem [resolvable:$true] %s212
          %215 = dma.hbm_to_vmem [thread:$0]  %s211, 48, %s213, %s201
        $region28: #{tpu_custom_call.1} parent=15 // pred_fallthru
          _
      $region16: #{tpu_custom_call.1} parent=5 // pred_fallthru
        _
      %p216 = scmp.le.s32.totalorder 1, %s18
      %p217 = scmp.lt.s32.totalorder %s18, 5
      %p218 = pnand %p216, %p217
      %p219 = pneg %p218
      // Predicated region
      $region29: #{tpu_custom_call.1} parent=5 // pred_check
        _
      $region30: #{tpu_custom_call.1} parent=5 // pred_check_branch
        %221 = sbr.rel (%p218) target = $region32
      $region31: #{tpu_custom_call.1} parent=5 // pred_region
        %s222 = ssub.s32 %s18, 1
        %s223 = sand.u32 %s43, 1
        %s224 = scalar_lea.sflag [#allocation3], %s223
        %s225 = sand.u32 %s43, 1
        %s226 = smul.addr %s225, 8
        %s227 = scalar_lea.vmem [#allocation2], %s226
        // Predicated region
        $region33: #{tpu_custom_call.1} parent=31 // pred_check
          %p228 = pneg %p56
        $region34: #{tpu_custom_call.1} parent=31 // pred_check_branch
          %230 = sbr.rel (%p228) target = $region36
        $region35: #{tpu_custom_call.1} parent=31 // pred_region
          %232 = dma.done %s224, 128
        $region36: #{tpu_custom_call.1} parent=31 // pred_fallthru
          _
        %s233 = sand.u32 %s23, 1
        %s234 = scalar_lea.sflag [#allocation6], %s233
        %s235 = sand.u32 %s69, 1
        %s236 = smul.addr %s235, 384
        %s237 = scalar_lea.vmem [#allocation5], %s236
        // Predicated region
        $region37: #{tpu_custom_call.1} parent=31 // pred_check
          %p238 = pneg %p82
        $region38: #{tpu_custom_call.1} parent=31 // pred_check_branch
          %240 = sbr.rel (%p238) target = $region40
        $region39: #{tpu_custom_call.1} parent=31 // pred_region
          %242 = dma.done %s234, 6144
        $region40: #{tpu_custom_call.1} parent=31 // pred_fallthru
          _
        %s243 = sand.u32 %s23, 1
        %s244 = scalar_lea.sflag [#allocation6], %s243
        %s245 = sand.u32 %s95, 1
        %s246 = smul.addr %s245, 3
        %s247 = scalar_lea.vmem [#allocation7], %s246
        // Predicated region
        $region41: #{tpu_custom_call.1} parent=31 // pred_check
          %p248 = pneg %p108
        $region42: #{tpu_custom_call.1} parent=31 // pred_check_branch
          %250 = sbr.rel (%p248) target = $region44
        $region43: #{tpu_custom_call.1} parent=31 // pred_region
          %252 = dma.done %s244, 48
        $region44: #{tpu_custom_call.1} parent=31 // pred_fallthru
          _
        %s253 = sand.u32 %s43, 1
        %s254 = scalar_lea.sflag [#allocation3], %s253
        %s255 = sand.u32 %s43, 1
        %s256 = smul.addr %s255, 8
        %s257 = scalar_lea.vmem [#allocation2], %s256
        %p258 = pneg %p56
        %p259 = pneg %p53
        %s260 = sand.u32 %s23, 1
        %s261 = scalar_lea.sflag [#allocation6], %s260
        %s262 = sand.u32 %s69, 1
        %s263 = smul.addr %s262, 384
        %s264 = scalar_lea.vmem [#allocation5], %s263
        %p265 = pneg %p82
        %p266 = pneg %p79
        %s267 = sand.u32 %s23, 1
        %s268 = scalar_lea.sflag [#allocation6], %s267
        %s269 = sand.u32 %s95, 1
        %s270 = smul.addr %s269, 3
        %s271 = scalar_lea.vmem [#allocation7], %s270
        %p272 = pneg %p108
        %p273 = pneg %p105
        %p274 = pneg %p136
        %p275 = pneg %p133
        %s276 = sand.u32 %s123, 1
        %s277 = scalar_lea.sflag [#allocation4], %s276
        %s278 = sand.u32 %s123, 1
        %s279 = smul.addr %s278, 8
        %s280 = scalar_lea.vmem [#allocation8], %s279
        %v282 = vld [vmem:[%s227] sm:$0xff]
        %v283 = vld [vmem:[%s237] sm:$0xff]
        %v284 = vld [vmem:[%s237 + $0x8] sm:$0xf]
        %v285 = vld [vmem:[%s237 + $0xc] sm:$0xff]
        %v286 = vld [vmem:[%s237 + $0x14] sm:$0xf]
        %v287 = vld [vmem:[%s237 + $0x18] sm:$0xff]
        %v288 = vld [vmem:[%s237 + $0x20] sm:$0xf]
        %v289 = vld [vmem:[%s237 + $0x24] sm:$0xff]
        %v290 = vld [vmem:[%s237 + $0x2c] sm:$0xf]
        %v291 = vld [vmem:[%s237 + $0x30] sm:$0xff]
        %v292 = vld [vmem:[%s237 + $0x38] sm:$0xf]
        %v293 = vld [vmem:[%s237 + $0x3c] sm:$0xff]
        %v294 = vld [vmem:[%s237 + $0x44] sm:$0xf]
        %v295 = vld [vmem:[%s237 + $0x48] sm:$0xff]
        %v296 = vld [vmem:[%s237 + $0x50] sm:$0xf]
        %v297 = vld [vmem:[%s237 + $0x54] sm:$0xff]
        %v298 = vld [vmem:[%s237 + $0x5c] sm:$0xf]
        %v299 = vld [vmem:[%s237 + $0x60] sm:$0xff]
        %v300 = vld [vmem:[%s237 + $0x68] sm:$0xf]
        %v301 = vld [vmem:[%s237 + $0x6c] sm:$0xff]
        %v302 = vld [vmem:[%s237 + $0x74] sm:$0xf]
        %v303 = vld [vmem:[%s237 + $0x78] sm:$0xff]
        %v304 = vld [vmem:[%s237 + $0x80] sm:$0xf]
        %v305 = vld [vmem:[%s237 + $0x84] sm:$0xff]
        %v306 = vld [vmem:[%s237 + $0x8c] sm:$0xf]
        %v307 = vld [vmem:[%s237 + $0x90] sm:$0xff]
        %v308 = vld [vmem:[%s237 + $0x98] sm:$0xf]
        %v309 = vld [vmem:[%s237 + $0x9c] sm:$0xff]
        %v310 = vld [vmem:[%s237 + $0xa4] sm:$0xf]
        %v311 = vld [vmem:[%s237 + $0xa8] sm:$0xff]
        %v312 = vld [vmem:[%s237 + $0xb0] sm:$0xf]
        %v313 = vld [vmem:[%s237 + $0xb4] sm:$0xff]
        %v314 = vld [vmem:[%s237 + $0xbc] sm:$0xf]
        %v315 = vld [vmem:[%s237 + $0xc0] sm:$0xff]
        %v316 = vld [vmem:[%s237 + $0xc8] sm:$0xf]
        %v317 = vld [vmem:[%s237 + $0xcc] sm:$0xff]
        %v318 = vld [vmem:[%s237 + $0xd4] sm:$0xf]
        %v319 = vld [vmem:[%s237 + $0xd8] sm:$0xff]
        %v320 = vld [vmem:[%s237 + $0xe0] sm:$0xf]
        %v321 = vld [vmem:[%s237 + $0xe4] sm:$0xff]
        %v322 = vld [vmem:[%s237 + $0xec] sm:$0xf]
        %v323 = vld [vmem:[%s237 + $0xf0] sm:$0xff]
        %v324 = vld [vmem:[%s237 + $0xf8] sm:$0xf]
        %v325 = vld [vmem:[%s237 + $0xfc] sm:$0xff]
        %v326 = vld [vmem:[%s237 + $0x104] sm:$0xf]
        %v327 = vld [vmem:[%s237 + $0x108] sm:$0xff]
        %v328 = vld [vmem:[%s237 + $0x110] sm:$0xf]
        %v329 = vld [vmem:[%s237 + $0x114] sm:$0xff]
        %v330 = vld [vmem:[%s237 + $0x11c] sm:$0xf]
        %v331 = vld [vmem:[%s237 + $0x120] sm:$0xff]
        %v332 = vld [vmem:[%s237 + $0x128] sm:$0xf]
        %v333 = vld [vmem:[%s237 + $0x12c] sm:$0xff]
        %v334 = vld [vmem:[%s237 + $0x134] sm:$0xf]
        %v335 = vld [vmem:[%s237 + $0x138] sm:$0xff]
        %v336 = vld [vmem:[%s237 + $0x140] sm:$0xf]
        %v337 = vld [vmem:[%s237 + $0x144] sm:$0xff]
        %v338 = vld [vmem:[%s237 + $0x14c] sm:$0xf]
        %v339 = vld [vmem:[%s237 + $0x150] sm:$0xff]
        %v340 = vld [vmem:[%s237 + $0x158] sm:$0xf]
        %v341 = vld [vmem:[%s237 + $0x15c] sm:$0xff]
        %v342 = vld [vmem:[%s237 + $0x164] sm:$0xf]
        %v343 = vld [vmem:[%s237 + $0x168] sm:$0xff]
        %v344 = vld [vmem:[%s237 + $0x170] sm:$0xf]
        %v345 = vld [vmem:[%s237 + $0x174] sm:$0xff]
        %v346 = vld [vmem:[%s237 + $0x17c] sm:$0xf]
        %v347 = vld [vmem:[%s247] sm:$0x7]
        %v349 = vperm.slane %v347, 0
        %v350 = vperm.slane %v347, 1
        %v351 = vperm.slane %v347, 2
        %v356 = vunpack.c.l.b16 %v282
        %v357 = vunpack.c.h.b16 %v282
        %v358 = vpack.c.b16 %v356, %v356
        %v359 = vpack.c.b16 %v357, %v357
        %v426 = vunpack.c.l.b16 %v283
        %v427 = vunpack.c.h.b16 %v283
        %v428 = vunpack.c.l.b16 %v284
        %v429 = vunpack.c.l.b16 %v285
        %v430 = vunpack.c.h.b16 %v285
        %v431 = vunpack.c.l.b16 %v286
        %v432 = vunpack.c.l.b16 %v287
        %v433 = vunpack.c.h.b16 %v287
        %v434 = vunpack.c.l.b16 %v288
        %v435 = vunpack.c.l.b16 %v289
        %v436 = vunpack.c.h.b16 %v289
        %v437 = vunpack.c.l.b16 %v290
        %v438 = vunpack.c.l.b16 %v291
        %v439 = vunpack.c.h.b16 %v291
        %v440 = vunpack.c.l.b16 %v292
        %v441 = vunpack.c.l.b16 %v293
        %v442 = vunpack.c.h.b16 %v293
        %v443 = vunpack.c.l.b16 %v294
        %v444 = vunpack.c.l.b16 %v295
        %v445 = vunpack.c.h.b16 %v295
        %v446 = vunpack.c.l.b16 %v296
        %v447 = vunpack.c.l.b16 %v297
        %v448 = vunpack.c.h.b16 %v297
        %v449 = vunpack.c.l.b16 %v298
        %v450 = vunpack.c.l.b16 %v299
        %v451 = vunpack.c.h.b16 %v299
        %v452 = vunpack.c.l.b16 %v300
        %v453 = vunpack.c.l.b16 %v301
        %v454 = vunpack.c.h.b16 %v301
        %v455 = vunpack.c.l.b16 %v302
        %v456 = vunpack.c.l.b16 %v303
        %v457 = vunpack.c.h.b16 %v303
        %v458 = vunpack.c.l.b16 %v304
        %v459 = vunpack.c.l.b16 %v305
        %v460 = vunpack.c.h.b16 %v305
        %v461 = vunpack.c.l.b16 %v306
        %v462 = vunpack.c.l.b16 %v307
        %v463 = vunpack.c.h.b16 %v307
        %v464 = vunpack.c.l.b16 %v308
        %v465 = vunpack.c.l.b16 %v309
        %v466 = vunpack.c.h.b16 %v309
        %v467 = vunpack.c.l.b16 %v310
        %v468 = vunpack.c.l.b16 %v311
        %v469 = vunpack.c.h.b16 %v311
        %v470 = vunpack.c.l.b16 %v312
        %v471 = vunpack.c.l.b16 %v313
        %v472 = vunpack.c.h.b16 %v313
        %v473 = vunpack.c.l.b16 %v314
        %v474 = vunpack.c.l.b16 %v315
        %v475 = vunpack.c.h.b16 %v315
        %v476 = vunpack.c.l.b16 %v316
        %v477 = vunpack.c.l.b16 %v317
        %v478 = vunpack.c.h.b16 %v317
        %v479 = vunpack.c.l.b16 %v318
        %v480 = vunpack.c.l.b16 %v319
        %v481 = vunpack.c.h.b16 %v319
        %v482 = vunpack.c.l.b16 %v320
        %v483 = vunpack.c.l.b16 %v321
        %v484 = vunpack.c.h.b16 %v321
        %v485 = vunpack.c.l.b16 %v322
        %v486 = vunpack.c.l.b16 %v323
        %v487 = vunpack.c.h.b16 %v323
        %v488 = vunpack.c.l.b16 %v324
        %v489 = vunpack.c.l.b16 %v325
        %v490 = vunpack.c.h.b16 %v325
        %v491 = vunpack.c.l.b16 %v326
        %v492 = vunpack.c.l.b16 %v327
        %v493 = vunpack.c.h.b16 %v327
        %v494 = vunpack.c.l.b16 %v328
        %v495 = vunpack.c.l.b16 %v329
        %v496 = vunpack.c.h.b16 %v329
        %v497 = vunpack.c.l.b16 %v330
        %v498 = vunpack.c.l.b16 %v331
        %v499 = vunpack.c.h.b16 %v331
        %v500 = vunpack.c.l.b16 %v332
        %v501 = vunpack.c.l.b16 %v333
        %v502 = vunpack.c.h.b16 %v333
        %v503 = vunpack.c.l.b16 %v334
        %v504 = vunpack.c.l.b16 %v335
        %v505 = vunpack.c.h.b16 %v335
        %v506 = vunpack.c.l.b16 %v336
        %v507 = vunpack.c.l.b16 %v337
        %v508 = vunpack.c.h.b16 %v337
        %v509 = vunpack.c.l.b16 %v338
        %v510 = vunpack.c.l.b16 %v339
        %v511 = vunpack.c.h.b16 %v339
        %v512 = vunpack.c.l.b16 %v340
        %v513 = vunpack.c.l.b16 %v341
        %v514 = vunpack.c.h.b16 %v341
        %v515 = vunpack.c.l.b16 %v342
        %v516 = vunpack.c.l.b16 %v343
        %v517 = vunpack.c.h.b16 %v343
        %v518 = vunpack.c.l.b16 %v344
        %v519 = vunpack.c.l.b16 %v345
        %v520 = vunpack.c.h.b16 %v345
        %v521 = vunpack.c.l.b16 %v346
        %v522 = vpack.c.b16 %v429, %v426
        %v523 = vpack.c.b16 %v430, %v427
        %v524 = vpack.c.b16 %v431, %v428
        %v525 = vpack.c.b16 %v435, %v432
        %v526 = vpack.c.b16 %v436, %v433
        %v527 = vpack.c.b16 %v437, %v434
        %v528 = vpack.c.b16 %v441, %v438
        %v529 = vpack.c.b16 %v442, %v439
        %v530 = vpack.c.b16 %v443, %v440
        %v531 = vpack.c.b16 %v447, %v444
        %v532 = vpack.c.b16 %v448, %v445
        %v533 = vpack.c.b16 %v449, %v446
        %v534 = vpack.c.b16 %v453, %v450
        %v535 = vpack.c.b16 %v454, %v451
        %v536 = vpack.c.b16 %v455, %v452
        %v537 = vpack.c.b16 %v459, %v456
        %v538 = vpack.c.b16 %v460, %v457
        %v539 = vpack.c.b16 %v461, %v458
        %v540 = vpack.c.b16 %v465, %v462
        %v541 = vpack.c.b16 %v466, %v463
        %v542 = vpack.c.b16 %v467, %v464
        %v543 = vpack.c.b16 %v471, %v468
        %v544 = vpack.c.b16 %v472, %v469
        %v545 = vpack.c.b16 %v473, %v470
        %v546 = vpack.c.b16 %v477, %v474
        %v547 = vpack.c.b16 %v478, %v475
        %v548 = vpack.c.b16 %v479, %v476
        %v549 = vpack.c.b16 %v483, %v480
        %v550 = vpack.c.b16 %v484, %v481
        %v551 = vpack.c.b16 %v485, %v482
        %v552 = vpack.c.b16 %v489, %v486
        %v553 = vpack.c.b16 %v490, %v487
        %v554 = vpack.c.b16 %v491, %v488
        %v555 = vpack.c.b16 %v495, %v492
        %v556 = vpack.c.b16 %v496, %v493
        %v557 = vpack.c.b16 %v497, %v494
        %v558 = vpack.c.b16 %v501, %v498
        %v559 = vpack.c.b16 %v502, %v499
        %v560 = vpack.c.b16 %v503, %v500
        %v561 = vpack.c.b16 %v507, %v504
        %v562 = vpack.c.b16 %v508, %v505
        %v563 = vpack.c.b16 %v509, %v506
        %v564 = vpack.c.b16 %v513, %v510
        %v565 = vpack.c.b16 %v514, %v511
        %v566 = vpack.c.b16 %v515, %v512
        %v567 = vpack.c.b16 %v519, %v516
        %v568 = vpack.c.b16 %v520, %v517
        %v569 = vpack.c.b16 %v521, %v518
        %618 = vmatpush.bf16.msra.mxu0 %v543
        %619 = vmatpush.bf16.msra.mxu0 %v540
        %620 = vmatpush.bf16.msra.mxu0 %v537
        %621 = vmatpush.bf16.msra.mxu0 %v534
        %622 = vmatpush.bf16.msra.mxu0 %v531
        %623 = vmatpush.bf16.msra.mxu0 %v528
        %624 = vmatpush.bf16.msra.mxu0 %v525
        %625 = vmatpush.bf16.msra.mxu0 %v522
        %626 = vmatmul.bf16.gmra.mxu0 %v358
        %v627 = vpop.f32.mrf.mxu0
        %v628 = vadd.f32 %v349, %v627
        %v629 = vpop.f32.mrf.mxu0
        %630 = vdwg.mxu0
        %631 = vmatpush.bf16.msra.mxu0 %v567
        %632 = vmatpush.bf16.msra.mxu0 %v564
        %633 = vmatpush.bf16.msra.mxu0 %v561
        %634 = vmatpush.bf16.msra.mxu0 %v558
        %635 = vmatpush.bf16.msra.mxu0 %v555
        %636 = vmatpush.bf16.msra.mxu0 %v552
        %637 = vmatpush.bf16.msra.mxu0 %v549
        %638 = vmatpush.bf16.msra.mxu0 %v546
        %639 = vmatmul.bf16.gmra.mxu0 %v359
        %v640 = vpop.f32.mrf.mxu0
        %v641 = vadd.f32 %v628, %v640
        %v642 = vpop.f32.mrf.mxu0
        %643 = vdwg.mxu0
        %644 = vmatpush.bf16.msra.mxu0 %v544
        %645 = vmatpush.bf16.msra.mxu0 %v541
        %646 = vmatpush.bf16.msra.mxu0 %v538
        %647 = vmatpush.bf16.msra.mxu0 %v535
        %648 = vmatpush.bf16.msra.mxu0 %v532
        %649 = vmatpush.bf16.msra.mxu0 %v529
        %650 = vmatpush.bf16.msra.mxu0 %v526
        %651 = vmatpush.bf16.msra.mxu0 %v523
        %652 = vmatmul.bf16.gmra.mxu0 %v358
        %v653 = vpop.f32.mrf.mxu0
        %v654 = vadd.f32 %v350, %v653
        %v655 = vpop.f32.mrf.mxu0
        %656 = vdwg.mxu0
        %657 = vmatpush.bf16.msra.mxu0 %v568
        %658 = vmatpush.bf16.msra.mxu0 %v565
        %659 = vmatpush.bf16.msra.mxu0 %v562
        %660 = vmatpush.bf16.msra.mxu0 %v559
        %661 = vmatpush.bf16.msra.mxu0 %v556
        %662 = vmatpush.bf16.msra.mxu0 %v553
        %663 = vmatpush.bf16.msra.mxu0 %v550
        %664 = vmatpush.bf16.msra.mxu0 %v547
        %665 = vmatmul.bf16.gmra.mxu0 %v359
        %v666 = vpop.f32.mrf.mxu0
        %v667 = vadd.f32 %v654, %v666
        %v668 = vpop.f32.mrf.mxu0
        %669 = vdwg.mxu0
        %670 = vmatpush.bf16.msra.mxu0 %v545
        %671 = vmatpush.bf16.msra.mxu0 %v542
        %672 = vmatpush.bf16.msra.mxu0 %v539
        %673 = vmatpush.bf16.msra.mxu0 %v536
        %674 = vmatpush.bf16.msra.mxu0 %v533
        %675 = vmatpush.bf16.msra.mxu0 %v530
        %676 = vmatpush.bf16.msra.mxu0 %v527
        %677 = vmatpush.bf16.msra.mxu0 %v524
        %678 = vmatmul.bf16.gmra.mxu0 %v358
        %v679 = vpop.f32.mrf.mxu0
        %v680 = vadd.f32 %v351, %v679
        %v681 = vpop.f32.mrf.mxu0
        %682 = vdwg.mxu0
        %683 = vmatpush.bf16.msra.mxu0 %v569
        %684 = vmatpush.bf16.msra.mxu0 %v566
        %685 = vmatpush.bf16.msra.mxu0 %v563
        %686 = vmatpush.bf16.msra.mxu0 %v560
        %687 = vmatpush.bf16.msra.mxu0 %v557
        %688 = vmatpush.bf16.msra.mxu0 %v554
        %689 = vmatpush.bf16.msra.mxu0 %v551
        %690 = vmatpush.bf16.msra.mxu0 %v548
        %691 = vmatmul.bf16.gmra.mxu0 %v359
        %v692 = vpop.f32.mrf.mxu0
        %v693 = vadd.f32 %v680, %v692
        %v694 = vpop.f32.mrf.mxu0
        %695 = vdwg.mxu0
        %v696 = vpack.c.bf16 %v667, %v641
        %v697 = vpack.c.bf16 %v693, %v693
        %v699 = vunpack.c.h.b16 %v696
        %v700 = vpack.c.b16 %v699, %v699
        %vm701 = vcmask 523264
        %v703 = vsel %vm701, %v696, 0
        %v706 = vsel %vm701, %v700, 0
        %708 = vmatpush.bf16.xpose.msra.mxu0 0
        %709 = vmatpush.bf16.xpose.msra.mxu0 0
        %710 = vmatpush.bf16.xpose.msra.mxu0 0
        %711 = vmatpush.bf16.xpose.msra.mxu0 0
        %712 = vmatpush.bf16.xpose.msra.mxu0 0
        %713 = vmatpush.bf16.xpose.msra.mxu0 0
        %714 = vmatpush.bf16.xpose.msra.mxu0 0
        %715 = vmatpush.bf16.xpose.msra.mxu0 %v706
        %716 = vmatmul.bf16.gmra.mxu0 %v703
        %v717 = vpop.f32.mrf.mxu0
        %v718 = vadd.f32 0.0, %v717
        %v719 = vpop.f32.mrf.mxu0
        %720 = vdwg.mxu0
        %vm721 = vcmask 64512
        %v722 = vsel %vm721, %v718, -inf
        %723 = vmax.xlane.f32.xlu0 %v722
        %v724 = vpop.xlane.xlu0 %723
        %v725 = vsub.f32 %v718, %v724
        %v726 = vmul.f32 %v725, 1.442695
        %v727 = vpow.pop %v726
        %v728 = vsel %vm721, %v727, 0.0
        %729 = vadd.xlane.f32.xlu0 %v728
        %v730 = vpop.xlane.xlu0 %729
        %v731 = vrcp.pop %v730
        %v732 = vmul.f32 %v730, %v731
        %v733 = vsub.f32 1.0, %v732
        %v734 = vmul.f32 %v731, %v733
        %v735 = vadd.f32 %v731, %v734
        %vm736 = vweird.f32 %v730
        %vm737 = vweird.f32 %v731
        %vm738 = vmor %vm736, %vm737
        %v739 = vsel %vm738, %v731, %v735
        %v740 = vand.u32 2147483647, %v730
        %vm741 = vcmp.eq.f32.partialorder %v740, 8.507059e+37
        %v742 = vand.u32 %v730, 2147483648
        %v743 = vor.u32 1.1754944e-38, %v742
        %v744 = vsel %vm741, %v743, %v739
        %v745 = vpack.c.bf16 %v727, %v727
        %v747 = vsel %vm721, %v745, 0
        %vm749 = vcmask 1043456
        %v751 = vsel %vm749, %v697, 0
        %753 = vmatpush.bf16.msra.mxu0 0
        %754 = vmatpush.bf16.msra.mxu0 0
        %755 = vmatpush.bf16.msra.mxu0 0
        %756 = vmatpush.bf16.msra.mxu0 0
        %757 = vmatpush.bf16.msra.mxu0 0
        %758 = vmatpush.bf16.msra.mxu0 0
        %759 = vmatpush.bf16.msra.mxu0 0
        %760 = vmatpush.bf16.msra.mxu0 %v751
        %761 = vmatmul.bf16.gmra.mxu0 %v747
        %v762 = vpop.f32.mrf.mxu0
        %v763 = vadd.f32 0.0, %v762
        %v764 = vpop.f32.mrf.mxu0
        %765 = vdwg.mxu0
        %v766 = vmul.f32 %v763, %v744
        %v767 = vunpack.c.l.b16 %v696
        %v768 = vpack.c.b16 %v767, %v767
        %769 = vrot.lane.b32.xlu0 %v768, 64
        %v770 = vpop.permute.xlu0 %769
        %771 = vrot.lane.b32.xlu0 %v700, 64
        %v772 = vpop.permute.xlu0 %771
        %v774 = vsel %vm701, %v770, 0
        %v777 = vsel %vm701, %v772, 0
        %779 = vmatpush.bf16.xpose.msra.mxu0 0
        %780 = vmatpush.bf16.xpose.msra.mxu0 0
        %781 = vmatpush.bf16.xpose.msra.mxu0 0
        %782 = vmatpush.bf16.xpose.msra.mxu0 0
        %783 = vmatpush.bf16.xpose.msra.mxu0 0
        %784 = vmatpush.bf16.xpose.msra.mxu0 0
        %785 = vmatpush.bf16.xpose.msra.mxu0 0
        %786 = vmatpush.bf16.xpose.msra.mxu0 %v777
        %787 = vmatmul.bf16.gmra.mxu0 %v774
        %v788 = vpop.f32.mrf.mxu0
        %v789 = vadd.f32 0.0, %v788
        %v790 = vpop.f32.mrf.mxu0
        %791 = vdwg.mxu0
        %v792 = vsel %vm721, %v789, -inf
        %793 = vmax.xlane.f32.xlu0 %v792
        %v794 = vpop.xlane.xlu0 %793
        %v795 = vsub.f32 %v789, %v794
        %v796 = vmul.f32 %v795, 1.442695
        %v797 = vpow.pop %v796
        %v798 = vsel %vm721, %v797, 0.0
        %799 = vadd.xlane.f32.xlu0 %v798
        %v800 = vpop.xlane.xlu0 %799
        %v801 = vrcp.pop %v800
        %v802 = vmul.f32 %v800, %v801
        %v803 = vsub.f32 1.0, %v802
        %v804 = vmul.f32 %v801, %v803
        %v805 = vadd.f32 %v801, %v804
        %vm806 = vweird.f32 %v800
        %vm807 = vweird.f32 %v801
        %vm808 = vmor %vm806, %vm807
        %v809 = vsel %vm808, %v801, %v805
        %v810 = vand.u32 2147483647, %v800
        %vm811 = vcmp.eq.f32.partialorder %v810, 8.507059e+37
        %v812 = vand.u32 %v800, 2147483648
        %v813 = vor.u32 1.1754944e-38, %v812
        %v814 = vsel %vm811, %v813, %v809
        %v815 = vpack.c.bf16 %v797, %v797
        %v817 = vunpack.c.l.b16 %v697
        %v818 = vpack.c.b16 %v817, %v817
        %819 = vrot.lane.b32.xlu0 %v818, 64
        %v820 = vpop.permute.xlu0 %819
        %v822 = vsel %vm721, %v815, 0
        %v825 = vsel %vm749, %v820, 0
        %827 = vmatpush.bf16.msra.mxu0 0
        %828 = vmatpush.bf16.msra.mxu0 0
        %829 = vmatpush.bf16.msra.mxu0 0
        %830 = vmatpush.bf16.msra.mxu0 0
        %831 = vmatpush.bf16.msra.mxu0 0
        %832 = vmatpush.bf16.msra.mxu0 0
        %833 = vmatpush.bf16.msra.mxu0 0
        %834 = vmatpush.bf16.msra.mxu0 %v825
        %835 = vmatmul.bf16.gmra.mxu0 %v822
        %v836 = vpop.f32.mrf.mxu0
        %v837 = vadd.f32 0.0, %v836
        %v838 = vpop.f32.mrf.mxu0
        %839 = vdwg.mxu0
        %v840 = vmul.f32 %v837, %v814
        %842 = vrot.lane.b32.xlu0 %v840, 64
        %v843 = vpop.permute.xlu0 %842
        %v845 = vsel %vm701, %v766, %v843
        %846 = vst [vmem:[%s280] sm:$0xff] %v845
        %s847 = sand.u32 %s123, 1
        %s848 = scalar_lea.sflag [#allocation4], %s847
        %s849 = sand.u32 %s123, 1
        %s850 = smul.addr %s849, 8
        %s851 = scalar_lea.vmem [#allocation8], %s850
        // Predicated region
        $region45: #{tpu_custom_call.1} parent=31 // pred_check
          %p852 = pneg %p133
        $region46: #{tpu_custom_call.1} parent=31 // pred_check_branch
          %854 = sbr.rel (%p852) target = $region48
        $region47: #{tpu_custom_call.1} parent=31 // pred_region
          %856 = vsyncadd %s848, 0
          %s857 = smul.addr %s27, 2
          %s858 = sadd.s32 %s28, %s857
          %s859 = smul.addr %s858, 8
          %s860 = scalar_lea.hbm %s3, %s859
          %s862 = sshll.u32 %s851, 4
          %s863 = int_to_ptr.vmem [resolvable:$true] %s862
          %s864 = sshll.u32 %s860, 4
          %s865 = int_to_ptr.hbm [resolvable:$true] %s864
          %867 = dma.vmem_to_hbm [thread:$0]  %s863, 128, %s865, %s848
        $region48: #{tpu_custom_call.1} parent=31 // pred_fallthru
          _
      $region32: #{tpu_custom_call.1} parent=5 // pred_fallthru
        _
      %p868 = scmp.le.s32.totalorder 2, %s18
      // Predicated region
      $region49: #{tpu_custom_call.1} parent=5 // pred_check
        %p869 = pneg %p868
      $region50: #{tpu_custom_call.1} parent=5 // pred_check_branch
        %871 = sbr.rel (%p869) target = $region52
      $region51: #{tpu_custom_call.1} parent=5 // pred_region
        %s872 = ssub.s32 %s18, 2
        // Predicated region
        $region53: #{tpu_custom_call.1} parent=51 // pred_check
          %p873 = pneg %p139
        $region54: #{tpu_custom_call.1} parent=51 // pred_check_branch
          %875 = sbr.rel (%p873) target = $region56
        $region55: #{tpu_custom_call.1} parent=51 // pred_region
          %s876 = sand.u32 %s124, 1
          %s877 = scalar_lea.sflag [#allocation4], %s876
          %s878 = sand.u32 %s124, 1
          %s879 = smul.addr %s878, 8
          %s880 = scalar_lea.vmem [#allocation8], %s879
          %882 = dma.done %s877, 128
        $region56: #{tpu_custom_call.1} parent=51 // pred_fallthru
          _
      $region52: #{tpu_custom_call.1} parent=5 // pred_fallthru
        _
    $region6: #{tpu_custom_call.1} parent=1 // loop_footer
      %s22 = sadd.s32 1, %s18
    $region7: #{tpu_custom_call.1} parent=1 // loop_footer_branch
      %17 = sbr.rel target = $region3
    $region8: #{tpu_custom_call.1} parent=1 // loop_exit
      _
    %883 = vsyncpa [#allocation3], 1
    %s884 = scalar_lea.sflag [#allocation3], 1
    %885 = vsyncpa %s884, 1
    %886 = vsyncpa [#allocation6], 1
    %s887 = scalar_lea.sflag [#allocation6], 1
    %888 = vsyncpa %s887, 1
    %889 = vsyncpa [#allocation4], 1
    %s890 = scalar_lea.sflag [#allocation4], 1
    %891 = vsyncpa %s890, 1

</llo_original>
